<compile_context>
chip_gen: v5e
topology: v5e:2x2
jax: 0.10.0
libtpu: 0.0.40
codegen_flags: <defaults>
</compile_context>

<pallas_src>
import functools

import jax
import jax.numpy as jnp
from jax.experimental import pallas as pl
from jax.experimental.pallas import tpu as pltpu

_EPS = 1e-6
_MIN_GRID = 4  # v7x: 2 cores x >= 2 steps each for pipeline overlap


# --------------------------------------------------------------------------
# Per-generation sizing
# --------------------------------------------------------------------------
def _tpu_targets():
    """Returns (target block bytes, scoped-VMEM clamp bytes) per generation."""
    try:
        vmem_cap = int(pltpu.get_tpu_info().vmem_capacity_bytes)
    except Exception:
        vmem_cap = 64 * 2**20  # be conservative (v7x-sized)
    if vmem_cap >= 100 * 2**20:          # v5e / v6e: 128 MiB physical
        return 8 * 2**20, 100 * 2**20
    return 8 * 2**20, 48 * 2**20         # v7x: 64 MiB physical


def _fused_budget_bytes(tb, per_sample_bytes, itemsize):
    """VMEM budget for the fused kernel: double-buffered in+out blocks plus
    f32 temporaries (upcast of x, pre-downcast output) and slack."""
    blk = tb * per_sample_bytes
    f32_blk = blk * 4 // itemsize
    return 4 * blk + 2 * f32_blk + (2 << 20)


def _pick_batch_tile(n, per_sample_bytes, itemsize, target_bytes, vmem_clamp):
    """Batch tile for the fused kernel. tb need not divide n (ragged last
    block); keep grid >= _MIN_GRID when possible and prefer an even grid."""
    tb = max(1, min(n, target_bytes // max(1, per_sample_bytes)))
    while tb > 1 and _fused_budget_bytes(tb, per_sample_bytes, itemsize) > vmem_clamp:
        tb -= 1
    if n >= _MIN_GRID:
        tb = min(tb, max(1, n // _MIN_GRID))
    else:
        tb = 1  # one sample per step: both v7x cores busy even for tiny N
    best = tb
    for cand in range(tb, max(1, tb // 2) - 1, -1):  # prefer even grid (v7x balance)
        if pl.cdiv(n, cand) % 2 == 0:
            best = cand
            break
    return best


def _pick_hw_tile(hw, c, itemsize, target_bytes, vmem_clamp):
    """HW tile for the two-pass path (multiple of 8, or the full HW)."""
    per_row = c * itemsize
    thw = max(1, min(hw, target_bytes // max(1, per_row)))
    if thw >= hw:
        return hw
    thw = max(8, (thw // 8) * 8)
    while thw > 8 and (4 * thw * per_row + 2 * thw * c * 4 + (2 << 20)) > vmem_clamp:
        thw -= 8
    return thw


# --------------------------------------------------------------------------
# Kernels (channels-last: blocks are (TB, HW, C) / (1, THW, C))
# --------------------------------------------------------------------------
def _grn_fused_kernel(*refs, use_bias):
    if use_bias:
        x_ref, gamma_ref, beta_ref, o_ref = refs
    else:
        x_ref, gamma_ref, o_ref = refs
        beta_ref = None

    x = x_ref[...].astype(jnp.float32)                      # (TB, HW, C)
    # L2 over spatial (sublane axis), strictly per (n, c).
    gx = jnp.sqrt(jnp.sum(x * x, axis=1, keepdims=True))    # (TB, 1, C)
    # Channel mean: one small cross-lane reduce per sample.
    gx_mean = jnp.mean(gx, axis=2, keepdims=True)           # (TB, 1, 1)
    nx = gx / (gx_mean + _EPS)                               # exact divide (TB*C scalars)
    scale = gamma_ref[...] * nx + 1.0                        # (TB, 1, C)

    out = scale * x
    if use_bias:
        out = out + beta_ref[...]
    o_ref[...] = out.astype(o_ref.dtype)


def _grn_reduce_kernel(x_ref, gamma_ref, scale_ref, ss_acc, *, use_mask, thw, hw_total):
    hw = pl.program_id(1)

    @pl.when(hw == 0)
    def _():
        ss_acc[...] = jnp.zeros_like(ss_acc)

    x = x_ref[...].astype(jnp.float32)                       # (1, THW, C)
    if use_mask:
        # Ragged last HW tile: zero out-of-range rows so they don't pollute
        # the sum of squares.
        row = jax.lax.broadcasted_iota(jnp.int32, x.shape, 1) + hw * thw
        x = jnp.where(row < hw_total, x, 0.0)
    ss_acc[...] += jnp.sum(x * x, axis=1, keepdims=True)     # (1, 1, C)

    @pl.when(hw == pl.num_programs(1) - 1)
    def _():
        gx = jnp.sqrt(ss_acc[...])
        gx_mean = jnp.mean(gx, axis=2, keepdims=True)
        nx = gx / (gx_mean + _EPS)
        scale_ref[...] = gamma_ref[...] * nx + 1.0            # (1, 1, C)


def _grn_apply_kernel(*refs, use_bias):
    if use_bias:
        x_ref, scale_ref, beta_ref, o_ref = refs
    else:
        x_ref, scale_ref, o_ref = refs
        beta_ref = None
    out = scale_ref[...] * x_ref[...].astype(jnp.float32)
    if use_bias:
        out = out + beta_ref[...]
    o_ref[...] = out.astype(o_ref.dtype)


# --------------------------------------------------------------------------
# Drivers
# --------------------------------------------------------------------------
def _grn_fused(x_cl, gamma_cl, beta_cl, *, use_bias, target_blk, vmem_clamp,
               batch_tile=None):
    N, HW, C = x_cl.shape
    itemsize = jnp.dtype(x_cl.dtype).itemsize
    per_sample_bytes = HW * C * itemsize

    if batch_tile is not None:
        tb = max(1, min(N, int(batch_tile)))
    else:
        tb = _pick_batch_tile(N, per_sample_bytes, itemsize, target_blk, vmem_clamp)
    grid = (pl.cdiv(N, tb),)

    vmem_limit = int(min(vmem_clamp,
                         max(32 * 2**20,
                             _fused_budget_bytes(tb, per_sample_bytes, itemsize))))

    cost = pl.CostEstimate(
        flops=4 * N * HW * C,
        transcendentals=N * C,
        bytes_accessed=2 * N * HW * C * itemsize + (2 if use_bias else 1) * C * 4,
    )

    param_spec = pl.BlockSpec((1, 1, C), lambda n: (0, 0, 0))
    in_specs = [pl.BlockSpec((tb, HW, C), lambda n: (n, 0, 0)), param_spec]
    args = [x_cl, gamma_cl]
    if use_bias:
        in_specs.append(param_spec)
        args.append(beta_cl)

    return pl.pallas_call(
        functools.partial(_grn_fused_kernel, use_bias=use_bias),
        out_shape=jax.ShapeDtypeStruct((N, HW, C), x_cl.dtype),
        grid_spec=pltpu.PrefetchScalarGridSpec(
            num_scalar_prefetch=0,
            grid=grid,
            in_specs=in_specs,
            out_specs=pl.BlockSpec((tb, HW, C), lambda n: (n, 0, 0)),
        ),
        compiler_params=pltpu.CompilerParams(
            dimension_semantics=("parallel",),
            vmem_limit_bytes=vmem_limit,
        ),
        cost_estimate=cost,
    )(*args)


def _grn_two_pass(x_cl, gamma_cl, beta_cl, *, use_bias, target_blk, vmem_clamp,
                  hw_tile=None):
    """HW-tiled reduce-then-apply path: used when one sample does not fit the
    VMEM budget (big H*W on v7x) or when forced. 3 HBM touches instead of 2."""
    N, HW, C = x_cl.shape
    itemsize = jnp.dtype(x_cl.dtype).itemsize

    if hw_tile is not None:
        thw = HW if hw_tile >= HW else max(8, (int(hw_tile) // 8) * 8)
    else:
        thw = _pick_hw_tile(HW, C, itemsize, target_blk, vmem_clamp)
    n_hw = pl.cdiv(HW, thw)
    need_mask = (thw * n_hw) != HW

    blk_bytes = thw * C * itemsize
    vmem_limit = int(min(vmem_clamp,
                         max(32 * 2**20,
                             4 * blk_bytes + 2 * thw * C * 4 + (4 << 20))))

    # ---- pass A: per-(n, c) sum of squares over HW, finished into the scale.
    scale = pl.pallas_call(
        functools.partial(_grn_reduce_kernel, use_mask=need_mask,
                          thw=thw, hw_total=HW),
        out_shape=jax.ShapeDtypeStruct((N, 1, C), jnp.float32),
        grid_spec=pltpu.PrefetchScalarGridSpec(
            num_scalar_prefetch=0,
            grid=(N, n_hw),
            in_specs=[
                pl.BlockSpec((1, thw, C), lambda n, h: (n, h, 0)),
                pl.BlockSpec((1, 1, C), lambda n, h: (0, 0, 0)),
            ],
            out_specs=pl.BlockSpec((1, 1, C), lambda n, h: (n, 0, 0)),
            scratch_shapes=[pltpu.VMEM((1, 1, C), jnp.float32)],
        ),
        compiler_params=pltpu.CompilerParams(
            dimension_semantics=("parallel", "arbitrary"),
            vmem_limit_bytes=vmem_limit,
        ),
        cost_estimate=pl.CostEstimate(
            flops=2 * N * HW * C, transcendentals=N * C,
            bytes_accessed=N * HW * C * itemsize + N * C * 4 + C * 4),
    )(x_cl, gamma_cl)

    # ---- pass B: elementwise (gamma*Nx + 1) * x (+ beta).
    in_specs = [
        pl.BlockSpec((1, thw, C), lambda n, h: (n, h, 0)),
        pl.BlockSpec((1, 1, C), lambda n, h: (n, 0, 0)),
    ]
    args = [x_cl, scale]
    if use_bias:
        in_specs.append(pl.BlockSpec((1, 1, C), lambda n, h: (0, 0, 0)))
        args.append(beta_cl)

    return pl.pallas_call(
        functools.partial(_grn_apply_kernel, use_bias=use_bias),
        out_shape=jax.ShapeDtypeStruct((N, HW, C), x_cl.dtype),
        grid_spec=pltpu.PrefetchScalarGridSpec(
            num_scalar_prefetch=0,
            grid=(N, n_hw),
            in_specs=in_specs,
            out_specs=pl.BlockSpec((1, thw, C), lambda n, h: (n, h, 0)),
        ),
        compiler_params=pltpu.CompilerParams(
            dimension_semantics=("parallel", "parallel"),
            vmem_limit_bytes=vmem_limit,
        ),
        cost_estimate=pl.CostEstimate(
            flops=2 * N * HW * C, transcendentals=0,
            bytes_accessed=2 * N * HW * C * itemsize + N * C * 4),
    )(*args)


def grn_forward(x, gamma, beta=None, *, force_two_pass=False, hw_tile=None,
                batch_tile=None):
    """GRN forward matching the PyTorch module.

    x: (N, C, H, W); gamma, beta: (1, C, 1, 1). beta=None == use_bias=False.
    force_two_pass / hw_tile / batch_tile are testing hooks.
    """
    N, C, H, W = x.shape
    HW = H * W
    use_bias = beta is not None
    itemsize = jnp.dtype(x.dtype).itemsize

    # Channels-last plumbing: C on lanes (GRN channel counts are multiples of
    # 128 for real models; ConvNeXt spatial sizes never are).
    x_cl = jnp.transpose(x.reshape(N, C, HW), (0, 2, 1))          # (N, HW, C)
    gamma_cl = gamma.reshape(1, 1, C).astype(jnp.float32)
    beta_cl = beta.reshape(1, 1, C).astype(jnp.float32) if use_bias else None

    target_blk, vmem_clamp = _tpu_targets()
    per_sample_bytes = HW * C * itemsize
    fused_ok = (not force_two_pass and
                _fused_budget_bytes(1, per_sample_bytes, itemsize) <= vmem_clamp)

    if fused_ok:
        out_cl = _grn_fused(x_cl, gamma_cl, beta_cl, use_bias=use_bias,
                            target_blk=target_blk, vmem_clamp=vmem_clamp,
                            batch_tile=batch_tile)
    else:
        out_cl = _grn_two_pass(x_cl, gamma_cl, beta_cl, use_bias=use_bias,
                               target_blk=target_blk, vmem_clamp=vmem_clamp,
                               hw_tile=hw_tile)

    return jnp.transpose(out_cl, (0, 2, 1)).reshape(N, C, H, W)


def grn_reference(x, gamma, beta=None):
    """Pure-JAX reference mirroring the PyTorch forward exactly."""
    gx = jnp.sqrt(jnp.sum(x * x, axis=(-1, -2), keepdims=True))   # (N, C, 1, 1)
    nx = gx / (jnp.mean(gx, axis=1, keepdims=True) + _EPS)        # (N, C, 1, 1)
    out = (gamma * nx + 1.0) * x
    if beta is not None:
        out = out + beta
    return out


if __name__ == "__main__":
    key = jax.random.PRNGKey(0)
    kx, kg, kb, kx2 = jax.random.split(key, 4)

    N, C, H, W = 2, 4, 16, 16
    x = jax.random.normal(kx, (N, C, H, W), dtype=jnp.float32)
    # nn.Parameter shapes (1, dim, 1, 1); PyTorch inits to zeros -- use small
    # random values so the normalization path is actually exercised.
    gamma = 0.1 * jax.random.normal(kg, (1, C, 1, 1), dtype=jnp.float32)
    beta = 0.1 * jax.random.normal(kb, (1, C, 1, 1), dtype=jnp.float32)

    tol = dict(atol=1e-5, rtol=1e-5)  # exact f32 math -- no approx reciprocal

    # Fused single-pass path, use_bias=True.
    out = jax.block_until_ready(grn_forward(x, gamma, beta))
    assert out.shape == (N, C, H, W)
    assert jnp.allclose(out, grn_reference(x, gamma, beta), **tol), "fused/bias"

    # use_bias=False specialization.
    out_nb = jax.block_until_ready(grn_forward(x, gamma, None))
    assert jnp.allclose(out_nb, grn_reference(x, gamma, None), **tol), "fused/no-bias"

    # Ragged batch grid: N=3 with batch_tile=2 -> grid=cdiv(3,2)=2, last block
    # half out-of-bounds (per-sample independence + masked stores).
    N2 = 3
    x2 = jax.random.normal(kx2, (N2, C, H, W), dtype=jnp.float32)
    out2 = jax.block_until_ready(grn_forward(x2, gamma, beta, batch_tile=2))
    assert jnp.allclose(out2, grn_reference(x2, gamma, beta), **tol), "fused/ragged-N"

    # Two-pass HW-tiled fallback with a ragged HW tile (256 / 96 -> masked tail).
    out3 = jax.block_until_ready(
        grn_forward(x2, gamma, beta, force_two_pass=True, hw_tile=96))
    assert jnp.allclose(out3, grn_reference(x2, gamma, beta), **tol), "two-pass/ragged-HW"

    print("KERNEL_OK")
</pallas_src>

<mosaic_0001>
module attributes {stable_mosaic.version = 11 : i64} {
  func.func @_grn_fused_kernel(%arg0: i32, %arg1: memref<1x256x4xf32, #tpu.memory_space<vmem>>, %arg2: memref<1x1x4xf32, #tpu.memory_space<vmem>>, %arg3: memref<1x1x4xf32, #tpu.memory_space<vmem>>, %arg4: memref<1x256x4xf32, #tpu.memory_space<vmem>>) attributes {dimension_semantics = [#tpu.dimension_semantics<parallel>], iteration_bounds = array<i64: 2>, scalar_prefetch = 0 : i64, scratch_operands = 0 : i64, tpu.core_type = #tpu.core_type<tc>, window_params = [{transform_indices = @transform_0, window_bounds = array<i64: 1, 256, 4>}, {pipeline_mode = #tpu.pipeline_mode<synchronous>, transform_indices = @transform_1, window_bounds = array<i64: 1, 1, 4>}, {pipeline_mode = #tpu.pipeline_mode<synchronous>, transform_indices = @transform_2, window_bounds = array<i64: 1, 1, 4>}, {transform_indices = @transform_3, window_bounds = array<i64: 1, 256, 4>}]} {
    %c0 = arith.constant 0 : index
    %c0_0 = arith.constant 0 : index
    %c0_1 = arith.constant 0 : index
    %0 = vector.load %arg1[%c0, %c0_0, %c0_1] : memref<1x256x4xf32, #tpu.memory_space<vmem>>, vector<1x256x4xf32>
    %1 = arith.mulf %0, %0 : vector<1x256x4xf32>
    %cst = arith.constant dense<0.000000e+00> : vector<1x4xf32>
    %2 = vector.multi_reduction <add>, %1, %cst [1] : vector<1x256x4xf32> to vector<1x4xf32>
    %3 = vector.shape_cast %2 : vector<1x4xf32> to vector<1x1x4xf32>
    %4 = math.sqrt %3 : vector<1x1x4xf32>
    %cst_2 = arith.constant dense<0.000000e+00> : vector<1x1xf32>
    %5 = vector.multi_reduction <add>, %4, %cst_2 [2] : vector<1x1x4xf32> to vector<1x1xf32>
    %6 = vector.shape_cast %5 : vector<1x1xf32> to vector<1x1x1xf32>
    %cst_3 = arith.constant 4.000000e+00 : f32
    %7 = vector.broadcast %cst_3 : f32 to vector<1x1x1xf32>
    %8 = arith.divf %6, %7 : vector<1x1x1xf32>
    %cst_4 = arith.constant 9.99999997E-7 : f32
    %9 = vector.broadcast %cst_4 : f32 to vector<1x1x1xf32>
    %10 = arith.addf %8, %9 : vector<1x1x1xf32>
    %11 = vector.broadcast %10 : vector<1x1x1xf32> to vector<1x1x4xf32>
    %12 = arith.divf %4, %11 : vector<1x1x4xf32>
    %c0_5 = arith.constant 0 : index
    %c0_6 = arith.constant 0 : index
    %c0_7 = arith.constant 0 : index
    %13 = vector.load %arg2[%c0_5, %c0_6, %c0_7] : memref<1x1x4xf32, #tpu.memory_space<vmem>>, vector<1x1x4xf32>
    %14 = arith.mulf %13, %12 : vector<1x1x4xf32>
    %cst_8 = arith.constant 1.000000e+00 : f32
    %15 = vector.broadcast %cst_8 : f32 to vector<1x1x4xf32>
    %16 = arith.addf %14, %15 : vector<1x1x4xf32>
    %17 = vector.broadcast %16 : vector<1x1x4xf32> to vector<1x256x4xf32>
    %18 = arith.mulf %17, %0 : vector<1x256x4xf32>
    %c0_9 = arith.constant 0 : index
    %c0_10 = arith.constant 0 : index
    %c0_11 = arith.constant 0 : index
    %19 = vector.load %arg3[%c0_9, %c0_10, %c0_11] : memref<1x1x4xf32, #tpu.memory_space<vmem>>, vector<1x1x4xf32>
    %20 = vector.broadcast %19 : vector<1x1x4xf32> to vector<1x256x4xf32>
    %21 = arith.addf %18, %20 : vector<1x256x4xf32>
    %c0_12 = arith.constant 0 : index
    %c0_13 = arith.constant 0 : index
    %c0_14 = arith.constant 0 : index
    %22 = vector.load %arg4[%c0_12, %c0_13, %c0_14] : memref<1x256x4xf32, #tpu.memory_space<vmem>>, vector<1x256x4xf32>
    tpu.vector_store %arg4[%c0_12, %c0_13, %c0_14], %21 {strides = array<i32>} : memref<1x256x4xf32, #tpu.memory_space<vmem>>, vector<1x256x4xf32>,
    return
  }
  func.func @transform_0(%arg0: i32) -> (i32, i32, i32) {
    %c0_i32 = arith.constant 0 : i32
    %c0_i32_0 = arith.constant 0 : i32
    %c0_i32_1 = arith.constant 0 : i32
    return %arg0, %c0_i32, %c0_i32_0 : i32, i32, i32
  }
  func.func @transform_1(%arg0: i32) -> (i32, i32, i32) {
    %c0_i32 = arith.constant 0 : i32
    %c0_i32_0 = arith.constant 0 : i32
    %c0_i32_1 = arith.constant 0 : i32
    %c0_i32_2 = arith.constant 0 : i32
    return %c0_i32, %c0_i32_0, %c0_i32_1 : i32, i32, i32
  }
  func.func @transform_2(%arg0: i32) -> (i32, i32, i32) {
    %c0_i32 = arith.constant 0 : i32
    %c0_i32_0 = arith.constant 0 : i32
    %c0_i32_1 = arith.constant 0 : i32
    %c0_i32_2 = arith.constant 0 : i32
    return %c0_i32, %c0_i32_0, %c0_i32_1 : i32, i32, i32
  }
  func.func @transform_3(%arg0: i32) -> (i32, i32, i32) {
    %c0_i32 = arith.constant 0 : i32
    %c0_i32_0 = arith.constant 0 : i32
    %c0_i32_1 = arith.constant 0 : i32
    return %arg0, %c0_i32, %c0_i32_0 : i32, i32, i32
  }
}

</mosaic_0001>

<llo_original>
// kernel: tpu_custom_call.1
$region0: #{tpu_custom_call.1}
  #allocation0 [shape = 'u32[]', space=smem, size = 0x4, offset = 0x4, fixed_abs, tag = 'smem constant byte address 0x4 - core index']
  #allocation1 [shape = 'u32[72,128]{1,0:T(1,128)}', space=vmem, size = 0x9000, scoped, tag = 'internal scratch']
  %s0 = inlined_call_operand.vmem [shape: f32[2,256,4], index: 0, kind: input, shape index: {}]
  %s1 = inlined_call_operand.vmem [shape: f32[1,1,4], index: 1, kind: input, shape index: {}]
  %s2 = inlined_call_operand.vmem [shape: f32[1,1,4], index: 2, kind: input, shape index: {}]
  %s3 = inlined_call_operand.vmem [shape: f32[2,256,4], index: 3, kind: output, shape index: {}]
  %s4 = sld [smem:[#allocation0]]
  $region45: #{tpu_custom_call.1} parent=0
    _
  %s6 = ssub.s32 1, %s4
  %s7 = scalar_select 0, %s6, %s4
  loop: start=0, step=1, limit=4
  $region2: #{tpu_custom_call.1} parent=0 // loop_pre_header
    _
  $region3: #{tpu_custom_call.1} parent=0 // loop_header
    %s9 = sphi 0, %s13
    %p10 = scmp.ge.s32.totalorder %s9, 4
    %s19 = sphi 0, %s21
    %s22 = sphi 0, %s19
    %s23 = sphi 0, %s22
    %s39 = sphi 0, %s23
    %s43 = sphi 0, %s43
    %s45 = sphi 0, %s43
    %s46 = sphi 0, %s45
    %s60 = sphi 0, %s46
    %s64 = sphi 0, %s64
    %s66 = sphi 0, %s64
    %s67 = sphi 0, %s66
    %s81 = sphi 0, %s67
    %s87 = sphi 0, %s89
    %s90 = sphi 0, %s87
    %s91 = sphi 0, %s90
    %s107 = sphi 0, %s91
  $region4: #{tpu_custom_call.1} parent=0 // loop_header_branch
    %12 = sbr.rel (%p10) target = $region8
  $region5: #{tpu_custom_call.1} parent=0 // loop_body
    %s14 = ssub.s32 %s9, 1
    %s15 = ssub.s32 %s9, 2
    %s16 = sadd.s32 %s9, 1
    %s17 = ssub.s32 %s9, %s16
    %p18 = scmp.eq.s32.totalorder %s17, 0
    %s20 = sadd.s32 %s19, 1
    %s21 = scalar_select %p18, %s19, %s20
    %p24 = pneg %p18
    %p25 = scmp.eq.s32.totalorder %s9, 1
    %p26 = por %p24, %p25
    %p27 = scmp.ne.s32.totalorder %s19, %s22
    %p28 = scmp.eq.s32.totalorder %s9, 0
    %p29 = por %p27, %p28
    %p30 = scmp.ne.s32.totalorder %s19, %s22
    %p31 = scmp.eq.s32.totalorder %s14, 1
    %p32 = por %p30, %p31
    %p33 = scmp.ne.s32.totalorder %s22, %s23
    %p34 = scmp.eq.s32.totalorder %s14, 0
    %p35 = por %p33, %p34
    %p36 = scmp.ne.s32.totalorder %s22, %s23
    %p37 = scmp.eq.s32.totalorder %s15, 1
    %p38 = por %p36, %p37
    %p40 = scmp.ne.s32.totalorder %s23, %s39
    %p41 = scmp.eq.s32.totalorder %s15, 0
    %p42 = por %p40, %p41
    %s44 = sadd.s32 %s43, 1
    %p47 = scmp.eq.s32.totalorder %s9, 1
    %p48 = scmp.ne.s32.totalorder %s43, %s45
    %p49 = scmp.eq.s32.totalorder %s9, 0
    %p50 = por %p48, %p49
    %p51 = scmp.ne.s32.totalorder %s43, %s45
    %p52 = scmp.eq.s32.totalorder %s14, 1
    %p53 = por %p51, %p52
    %p54 = scmp.ne.s32.totalorder %s45, %s46
    %p55 = scmp.eq.s32.totalorder %s14, 0
    %p56 = por %p54, %p55
    %p57 = scmp.ne.s32.totalorder %s45, %s46
    %p58 = scmp.eq.s32.totalorder %s15, 1
    %p59 = por %p57, %p58
    %p61 = scmp.ne.s32.totalorder %s46, %s60
    %p62 = scmp.eq.s32.totalorder %s15, 0
    %p63 = por %p61, %p62
    %s65 = sadd.s32 %s64, 1
    %p68 = scmp.eq.s32.totalorder %s9, 1
    %p69 = scmp.ne.s32.totalorder %s64, %s66
    %p70 = scmp.eq.s32.totalorder %s9, 0
    %p71 = por %p69, %p70
    %p72 = scmp.ne.s32.totalorder %s64, %s66
    %p73 = scmp.eq.s32.totalorder %s14, 1
    %p74 = por %p72, %p73
    %p75 = scmp.ne.s32.totalorder %s66, %s67
    %p76 = scmp.eq.s32.totalorder %s14, 0
    %p77 = por %p75, %p76
    %p78 = scmp.ne.s32.totalorder %s66, %s67
    %p79 = scmp.eq.s32.totalorder %s15, 1
    %p80 = por %p78, %p79
    %p82 = scmp.ne.s32.totalorder %s67, %s81
    %p83 = scmp.eq.s32.totalorder %s15, 0
    %p84 = por %p82, %p83
    %s85 = ssub.s32 %s9, %s16
    %p86 = scmp.eq.s32.totalorder %s85, 0
    %s88 = sadd.s32 %s87, 1
    %s89 = scalar_select %p86, %s87, %s88
    %p92 = pneg %p86
    %p93 = scmp.eq.s32.totalorder %s9, 1
    %p94 = por %p92, %p93
    %p95 = scmp.ne.s32.totalorder %s87, %s90
    %p96 = scmp.eq.s32.totalorder %s9, 0
    %p97 = por %p95, %p96
    %p98 = scmp.ne.s32.totalorder %s87, %s90
    %p99 = scmp.eq.s32.totalorder %s14, 1
    %p100 = por %p98, %p99
    %p101 = scmp.ne.s32.totalorder %s90, %s91
    %p102 = scmp.eq.s32.totalorder %s14, 0
    %p103 = por %p101, %p102
    %p104 = scmp.ne.s32.totalorder %s90, %s91
    %p105 = scmp.eq.s32.totalorder %s15, 1
    %p106 = por %p104, %p105
    %p108 = scmp.ne.s32.totalorder %s91, %s107
    %p109 = scmp.eq.s32.totalorder %s15, 0
    %p110 = por %p108, %p109
    %p111 = scmp.le.s32.totalorder 1, %s9
    %p112 = scmp.lt.s32.totalorder %s9, 3
    %p113 = pnand %p111, %p112
    %p114 = pneg %p113
    // Predicated region
    $region9: #{tpu_custom_call.1} parent=5 // pred_check
      _
    $region10: #{tpu_custom_call.1} parent=5 // pred_check_branch
      %116 = sbr.rel (%p113) target = $region12
    $region11: #{tpu_custom_call.1} parent=5 // pred_region
      %s117 = ssub.s32 %s9, 1
      // Predicated region
      $region13: #{tpu_custom_call.1} parent=11 // pred_check
        %p118 = pneg %p56
      $region14: #{tpu_custom_call.1} parent=11 // pred_check_branch
        %120 = sbr.rel (%p118) target = $region16
      $region15: #{tpu_custom_call.1} parent=11 // pred_region
        _
      $region16: #{tpu_custom_call.1} parent=11 // pred_fallthru
        _
      // Predicated region
      $region17: #{tpu_custom_call.1} parent=11 // pred_check
        %p121 = pneg %p77
      $region18: #{tpu_custom_call.1} parent=11 // pred_check_branch
        %123 = sbr.rel (%p121) target = $region20
      $region19: #{tpu_custom_call.1} parent=11 // pred_region
        _
      $region20: #{tpu_custom_call.1} parent=11 // pred_fallthru
        _
    $region12: #{tpu_custom_call.1} parent=5 // pred_fallthru
      _
    %p124 = scmp.lt.s32.totalorder %s9, 2
    // Predicated region
    $region21: #{tpu_custom_call.1} parent=5 // pred_check
      %p125 = pneg %p124
    $region22: #{tpu_custom_call.1} parent=5 // pred_check_branch
      %127 = sbr.rel (%p125) target = $region24
    $region23: #{tpu_custom_call.1} parent=5 // pred_region
      // Predicated region
      $region25: #{tpu_custom_call.1} parent=23 // pred_check
        %p128 = pneg %p29
      $region26: #{tpu_custom_call.1} parent=23 // pred_check_branch
        %130 = sbr.rel (%p128) target = $region28
      $region27: #{tpu_custom_call.1} parent=23 // pred_region
        %p131 = scmp.lt.s32.totalorder %s9, 1
        %s132 = scalar_select %p131, %s9, 1
        %s133 = smul.addr %s132, 32
        %s134 = smul.addr %s133, 8
        %s135 = scalar_lea.vmem %s0, %s134
      $region28: #{tpu_custom_call.1} parent=23 // pred_fallthru
        _
    $region24: #{tpu_custom_call.1} parent=5 // pred_fallthru
      _
    %p136 = scmp.le.s32.totalorder 1, %s9
    %p137 = scmp.lt.s32.totalorder %s9, 3
    %p138 = pnand %p136, %p137
    %p139 = pneg %p138
    // Predicated region
    $region29: #{tpu_custom_call.1} parent=5 // pred_check
      _
    $region30: #{tpu_custom_call.1} parent=5 // pred_check_branch
      %141 = sbr.rel (%p138) target = $region32
    $region31: #{tpu_custom_call.1} parent=5 // pred_region
      %s142 = ssub.s32 %s9, 1
      %p143 = scmp.lt.s32.totalorder %s14, 1
      %s144 = scalar_select %p143, %s14, 1
      %s145 = smul.addr %s144, 32
      %s146 = smul.addr %s145, 8
      %s147 = scalar_lea.vmem %s0, %s146
      %p148 = pneg %p35
      %p149 = pneg %p32
      %p150 = pneg %p56
      %p151 = pneg %p53
      %p152 = pneg %p77
      %p153 = pneg %p74
      %p154 = pneg %p103
      %p155 = pneg %p100
      %p156 = scmp.lt.s32.totalorder %s14, 1
      %s157 = scalar_select %p156, %s14, 1
      %s158 = smul.addr %s157, 32
      %s159 = smul.addr %s158, 8
      %s160 = scalar_lea.vmem %s3, %s159
      %p161 = scmp.lt.s32.totalorder %s14, 1
      %s162 = scalar_select %p161, %s14, 1
      %s163 = smul.addr %s162, 32
      %s164 = smul.addr %s163, 8
      %s165 = scalar_lea.vmem %s0, %s164
      %p166 = scmp.lt.s32.totalorder %s14, 1
      %s167 = scalar_select %p166, %s14, 1
      %s168 = smul.addr %s167, 32
      %s169 = smul.addr %s168, 8
      %s170 = scalar_lea.vmem %s3, %s169
      %v171 = vld [vmem:[%s165] sm:$0xff]
      %v172 = vld [vmem:[%s165 + $0x8] sm:$0xff]
      %v173 = vld [vmem:[%s165 + $0x10] sm:$0xff]
      %v174 = vld [vmem:[%s165 + $0x18] sm:$0xff]
      %v175 = vld [vmem:[%s165 + $0x20] sm:$0xff]
      %v176 = vld [vmem:[%s165 + $0x28] sm:$0xff]
      %v177 = vld [vmem:[%s165 + $0x30] sm:$0xff]
      %v178 = vld [vmem:[%s165 + $0x38] sm:$0xff]
      %v179 = vld [vmem:[%s165 + $0x40] sm:$0xff]
      %v180 = vld [vmem:[%s165 + $0x48] sm:$0xff]
      %v181 = vld [vmem:[%s165 + $0x50] sm:$0xff]
      %v182 = vld [vmem:[%s165 + $0x58] sm:$0xff]
      %v183 = vld [vmem:[%s165 + $0x60] sm:$0xff]
      %v184 = vld [vmem:[%s165 + $0x68] sm:$0xff]
      %v185 = vld [vmem:[%s165 + $0x70] sm:$0xff]
      %v186 = vld [vmem:[%s165 + $0x78] sm:$0xff]
      %v187 = vld [vmem:[%s165 + $0x80] sm:$0xff]
      %v188 = vld [vmem:[%s165 + $0x88] sm:$0xff]
      %v189 = vld [vmem:[%s165 + $0x90] sm:$0xff]
      %v190 = vld [vmem:[%s165 + $0x98] sm:$0xff]
      %v191 = vld [vmem:[%s165 + $0xa0] sm:$0xff]
      %v192 = vld [vmem:[%s165 + $0xa8] sm:$0xff]
      %v193 = vld [vmem:[%s165 + $0xb0] sm:$0xff]
      %v194 = vld [vmem:[%s165 + $0xb8] sm:$0xff]
      %v195 = vld [vmem:[%s165 + $0xc0] sm:$0xff]
      %v196 = vld [vmem:[%s165 + $0xc8] sm:$0xff]
      %v197 = vld [vmem:[%s165 + $0xd0] sm:$0xff]
      %v198 = vld [vmem:[%s165 + $0xd8] sm:$0xff]
      %v199 = vld [vmem:[%s165 + $0xe0] sm:$0xff]
      %v200 = vld [vmem:[%s165 + $0xe8] sm:$0xff]
      %v201 = vld [vmem:[%s165 + $0xf0] sm:$0xff]
      %v202 = vld [vmem:[%s165 + $0xf8] sm:$0xff]
      %v203 = vmul.f32 %v171, %v171
      %v204 = vmul.f32 %v172, %v172
      %v205 = vmul.f32 %v173, %v173
      %v206 = vmul.f32 %v174, %v174
      %v207 = vmul.f32 %v175, %v175
      %v208 = vmul.f32 %v176, %v176
      %v209 = vmul.f32 %v177, %v177
      %v210 = vmul.f32 %v178, %v178
      %v211 = vmul.f32 %v179, %v179
      %v212 = vmul.f32 %v180, %v180
      %v213 = vmul.f32 %v181, %v181
      %v214 = vmul.f32 %v182, %v182
      %v215 = vmul.f32 %v183, %v183
      %v216 = vmul.f32 %v184, %v184
      %v217 = vmul.f32 %v185, %v185
      %v218 = vmul.f32 %v186, %v186
      %v219 = vmul.f32 %v187, %v187
      %v220 = vmul.f32 %v188, %v188
      %v221 = vmul.f32 %v189, %v189
      %v222 = vmul.f32 %v190, %v190
      %v223 = vmul.f32 %v191, %v191
      %v224 = vmul.f32 %v192, %v192
      %v225 = vmul.f32 %v193, %v193
      %v226 = vmul.f32 %v194, %v194
      %v227 = vmul.f32 %v195, %v195
      %v228 = vmul.f32 %v196, %v196
      %v229 = vmul.f32 %v197, %v197
      %v230 = vmul.f32 %v198, %v198
      %v231 = vmul.f32 %v199, %v199
      %v232 = vmul.f32 %v200, %v200
      %v233 = vmul.f32 %v201, %v201
      %v234 = vmul.f32 %v202, %v202
      %vm235 = vcmask 31744
      %v236 = vsel %vm235, %v203, 0.0
      %v237 = vsel %vm235, %v204, 0.0
      %v238 = vadd.f32 %v236, %v237
      %v239 = vsel %vm235, %v205, 0.0
      %v240 = vadd.f32 %v238, %v239
      %v241 = vsel %vm235, %v206, 0.0
      %v242 = vadd.f32 %v240, %v241
      %v243 = vsel %vm235, %v207, 0.0
      %v244 = vadd.f32 %v242, %v243
      %v245 = vsel %vm235, %v208, 0.0
      %v246 = vadd.f32 %v244, %v245
      %v247 = vsel %vm235, %v209, 0.0
      %v248 = vadd.f32 %v246, %v247
      %v249 = vsel %vm235, %v210, 0.0
      %v250 = vadd.f32 %v248, %v249
      %v251 = vsel %vm235, %v211, 0.0
      %v252 = vadd.f32 %v250, %v251
      %v253 = vsel %vm235, %v212, 0.0
      %v254 = vadd.f32 %v252, %v253
      %v255 = vsel %vm235, %v213, 0.0
      %v256 = vadd.f32 %v254, %v255
      %v257 = vsel %vm235, %v214, 0.0
      %v258 = vadd.f32 %v256, %v257
      %v259 = vsel %vm235, %v215, 0.0
      %v260 = vadd.f32 %v258, %v259
      %v261 = vsel %vm235, %v216, 0.0
      %v262 = vadd.f32 %v260, %v261
      %v263 = vsel %vm235, %v217, 0.0
      %v264 = vadd.f32 %v262, %v263
      %v265 = vsel %vm235, %v218, 0.0
      %v266 = vadd.f32 %v264, %v265
      %v267 = vsel %vm235, %v219, 0.0
      %v268 = vadd.f32 %v266, %v267
      %v269 = vsel %vm235, %v220, 0.0
      %v270 = vadd.f32 %v268, %v269
      %v271 = vsel %vm235, %v221, 0.0
      %v272 = vadd.f32 %v270, %v271
      %v273 = vsel %vm235, %v222, 0.0
      %v274 = vadd.f32 %v272, %v273
      %v275 = vsel %vm235, %v223, 0.0
      %v276 = vadd.f32 %v274, %v275
      %v277 = vsel %vm235, %v224, 0.0
      %v278 = vadd.f32 %v276, %v277
      %v279 = vsel %vm235, %v225, 0.0
      %v280 = vadd.f32 %v278, %v279
      %v281 = vsel %vm235, %v226, 0.0
      %v282 = vadd.f32 %v280, %v281
      %v283 = vsel %vm235, %v227, 0.0
      %v284 = vadd.f32 %v282, %v283
      %v285 = vsel %vm235, %v228, 0.0
      %v286 = vadd.f32 %v284, %v285
      %v287 = vsel %vm235, %v229, 0.0
      %v288 = vadd.f32 %v286, %v287
      %v289 = vsel %vm235, %v230, 0.0
      %v290 = vadd.f32 %v288, %v289
      %v291 = vsel %vm235, %v231, 0.0
      %v292 = vadd.f32 %v290, %v291
      %v293 = vsel %vm235, %v232, 0.0
      %v294 = vadd.f32 %v292, %v293
      %v295 = vsel %vm235, %v233, 0.0
      %v296 = vadd.f32 %v294, %v295
      %v297 = vsel %vm235, %v234, 0.0
      %v298 = vadd.f32 %v296, %v297
      %v299 = vrot.slane %v298, 4
      %v300 = vadd.f32 %v298, %v299
      %v301 = vrot.slane %v300, 2
      %v302 = vadd.f32 %v300, %v301
      %v303 = vrot.slane %v302, 1
      %v304 = vadd.f32 %v302, %v303
      %v305 = vrsqrt.pop %v304
      %v306 = vmul.f32 %v305, %v304
      %v307 = vmul.f32 %v306, %v305
      %v308 = vmul.f32 0.5, %v307
      %v309 = vsub.f32 1.5, %v308
      %v310 = vmul.f32 %v305, %v309
      %v311 = vmul.f32 %v304, %v310
      %vm312 = vcmp.eq.f32.partialorder %v304, inf
      %v313 = vsel %vm312, %v304, %v311
      %vm314 = vcmp.eq.f32.partialorder %v304, 0.0
      %v315 = vand.u32 %v304, 2147483648
      %v316 = vsel %vm314, %v315, %v313
      %v317 = vsel %vm235, %v316, 0.0
      %318 = vadd.xlane.f32.xlu0 %v317
      %v319 = vpop.xlane.xlu0 %318
      %v320 = vrcp.pop 4.0
      %v321 = vmul.f32 4.0, %v320
      %v322 = vsub.f32 1.0, %v321
      %v323 = vmul.f32 %v320, %v322
      %v324 = vadd.f32 %v320, %v323
      %vm325 = vweird.f32 %v320
      %v326 = vsel %vm325, %v320, %v324
      %v327 = vmul.f32 %v319, %v326
      %v328 = vadd.f32 %v327, 1e-06
      %v329 = vrcp.pop %v328
      %v330 = vmul.f32 %v328, %v329
      %v331 = vsub.f32 1.0, %v330
      %v332 = vmul.f32 %v329, %v331
      %v333 = vadd.f32 %v329, %v332
      %vm334 = vweird.f32 %v328
      %vm335 = vweird.f32 %v329
      %vm336 = vmor %vm334, %vm335
      %v337 = vsel %vm336, %v329, %v333
      %v338 = vand.u32 2147483647, %v328
      %vm339 = vcmp.eq.f32.partialorder %v338, 8.507059e+37
      %v340 = vand.u32 %v328, 2147483648
      %v341 = vor.u32 1.1754944e-38, %v340
      %v342 = vsel %vm339, %v341, %v337
      %v343 = vmul.f32 %v316, %v342
      %v344 = vld [vmem:[%s1] sm:$0x1]
      %v345 = vmul.f32 %v344, %v343
      %v346 = vadd.f32 %v345, 1.0
      %v348 = vperm.slane %v346, 0
      %v350 = vmul.f32 %v348, %v171
      %v351 = vmul.f32 %v348, %v172
      %v352 = vmul.f32 %v348, %v173
      %v353 = vmul.f32 %v348, %v174
      %v354 = vmul.f32 %v348, %v175
      %v355 = vmul.f32 %v348, %v176
      %v356 = vmul.f32 %v348, %v177
      %v357 = vmul.f32 %v348, %v178
      %v358 = vmul.f32 %v348, %v179
      %v359 = vmul.f32 %v348, %v180
      %v360 = vmul.f32 %v348, %v181
      %v361 = vmul.f32 %v348, %v182
      %v362 = vmul.f32 %v348, %v183
      %v363 = vmul.f32 %v348, %v184
      %v364 = vmul.f32 %v348, %v185
      %v365 = vmul.f32 %v348, %v186
      %v366 = vmul.f32 %v348, %v187
      %v367 = vmul.f32 %v348, %v188
      %v368 = vmul.f32 %v348, %v189
      %v369 = vmul.f32 %v348, %v190
      %v370 = vmul.f32 %v348, %v191
      %v371 = vmul.f32 %v348, %v192
      %v372 = vmul.f32 %v348, %v193
      %v373 = vmul.f32 %v348, %v194
      %v374 = vmul.f32 %v348, %v195
      %v375 = vmul.f32 %v348, %v196
      %v376 = vmul.f32 %v348, %v197
      %v377 = vmul.f32 %v348, %v198
      %v378 = vmul.f32 %v348, %v199
      %v379 = vmul.f32 %v348, %v200
      %v380 = vmul.f32 %v348, %v201
      %v381 = vmul.f32 %v348, %v202
      %v382 = vld [vmem:[%s2] sm:$0x1]
      %v384 = vperm.slane %v382, 0
      %v386 = vadd.f32 %v350, %v384
      %v387 = vadd.f32 %v351, %v384
      %v388 = vadd.f32 %v352, %v384
      %v389 = vadd.f32 %v353, %v384
      %v390 = vadd.f32 %v354, %v384
      %v391 = vadd.f32 %v355, %v384
      %v392 = vadd.f32 %v356, %v384
      %v393 = vadd.f32 %v357, %v384
      %v394 = vadd.f32 %v358, %v384
      %v395 = vadd.f32 %v359, %v384
      %v396 = vadd.f32 %v360, %v384
      %v397 = vadd.f32 %v361, %v384
      %v398 = vadd.f32 %v362, %v384
      %v399 = vadd.f32 %v363, %v384
      %v400 = vadd.f32 %v364, %v384
      %v401 = vadd.f32 %v365, %v384
      %v402 = vadd.f32 %v366, %v384
      %v403 = vadd.f32 %v367, %v384
      %v404 = vadd.f32 %v368, %v384
      %v405 = vadd.f32 %v369, %v384
      %v406 = vadd.f32 %v370, %v384
      %v407 = vadd.f32 %v371, %v384
      %v408 = vadd.f32 %v372, %v384
      %v409 = vadd.f32 %v373, %v384
      %v410 = vadd.f32 %v374, %v384
      %v411 = vadd.f32 %v375, %v384
      %v412 = vadd.f32 %v376, %v384
      %v413 = vadd.f32 %v377, %v384
      %v414 = vadd.f32 %v378, %v384
      %v415 = vadd.f32 %v379, %v384
      %v416 = vadd.f32 %v380, %v384
      %v417 = vadd.f32 %v381, %v384
      %418 = vst.msk [vmem:[%s170] sm:$0xff] %vm235, %v386
      %419 = vst.msk [vmem:[%s170 + $0x8] sm:$0xff] %vm235, %v387
      %420 = vst.msk [vmem:[%s170 + $0x10] sm:$0xff] %vm235, %v388
      %421 = vst.msk [vmem:[%s170 + $0x18] sm:$0xff] %vm235, %v389
      %422 = vst.msk [vmem:[%s170 + $0x20] sm:$0xff] %vm235, %v390
      %423 = vst.msk [vmem:[%s170 + $0x28] sm:$0xff] %vm235, %v391
      %424 = vst.msk [vmem:[%s170 + $0x30] sm:$0xff] %vm235, %v392
      %425 = vst.msk [vmem:[%s170 + $0x38] sm:$0xff] %vm235, %v393
      %426 = vst.msk [vmem:[%s170 + $0x40] sm:$0xff] %vm235, %v394
      %427 = vst.msk [vmem:[%s170 + $0x48] sm:$0xff] %vm235, %v395
      %428 = vst.msk [vmem:[%s170 + $0x50] sm:$0xff] %vm235, %v396
      %429 = vst.msk [vmem:[%s170 + $0x58] sm:$0xff] %vm235, %v397
      %430 = vst.msk [vmem:[%s170 + $0x60] sm:$0xff] %vm235, %v398
      %431 = vst.msk [vmem:[%s170 + $0x68] sm:$0xff] %vm235, %v399
      %432 = vst.msk [vmem:[%s170 + $0x70] sm:$0xff] %vm235, %v400
      %433 = vst.msk [vmem:[%s170 + $0x78] sm:$0xff] %vm235, %v401
      %434 = vst.msk [vmem:[%s170 + $0x80] sm:$0xff] %vm235, %v402
      %435 = vst.msk [vmem:[%s170 + $0x88] sm:$0xff] %vm235, %v403
      %436 = vst.msk [vmem:[%s170 + $0x90] sm:$0xff] %vm235, %v404
      %437 = vst.msk [vmem:[%s170 + $0x98] sm:$0xff] %vm235, %v405
      %438 = vst.msk [vmem:[%s170 + $0xa0] sm:$0xff] %vm235, %v406
      %439 = vst.msk [vmem:[%s170 + $0xa8] sm:$0xff] %vm235, %v407
      %440 = vst.msk [vmem:[%s170 + $0xb0] sm:$0xff] %vm235, %v408
      %441 = vst.msk [vmem:[%s170 + $0xb8] sm:$0xff] %vm235, %v409
      %442 = vst.msk [vmem:[%s170 + $0xc0] sm:$0xff] %vm235, %v410
      %443 = vst.msk [vmem:[%s170 + $0xc8] sm:$0xff] %vm235, %v411
      %444 = vst.msk [vmem:[%s170 + $0xd0] sm:$0xff] %vm235, %v412
      %445 = vst.msk [vmem:[%s170 + $0xd8] sm:$0xff] %vm235, %v413
      %446 = vst.msk [vmem:[%s170 + $0xe0] sm:$0xff] %vm235, %v414
      %447 = vst.msk [vmem:[%s170 + $0xe8] sm:$0xff] %vm235, %v415
      %448 = vst.msk [vmem:[%s170 + $0xf0] sm:$0xff] %vm235, %v416
      %449 = vst.msk [vmem:[%s170 + $0xf8] sm:$0xff] %vm235, %v417
      %p450 = scmp.lt.s32.totalorder %s14, 1
      %s451 = scalar_select %p450, %s14, 1
      %s452 = smul.addr %s451, 32
      %s453 = smul.addr %s452, 8
      %s454 = scalar_lea.vmem %s3, %s453
      // Predicated region
      $region33: #{tpu_custom_call.1} parent=31 // pred_check
        %p455 = pneg %p100
      $region34: #{tpu_custom_call.1} parent=31 // pred_check_branch
        %457 = sbr.rel (%p455) target = $region36
      $region35: #{tpu_custom_call.1} parent=31 // pred_region
        _
      $region36: #{tpu_custom_call.1} parent=31 // pred_fallthru
        _
    $region32: #{tpu_custom_call.1} parent=5 // pred_fallthru
      _
    %p458 = scmp.le.s32.totalorder 2, %s9
    // Predicated region
    $region37: #{tpu_custom_call.1} parent=5 // pred_check
      %p459 = pneg %p458
    $region38: #{tpu_custom_call.1} parent=5 // pred_check_branch
      %461 = sbr.rel (%p459) target = $region40
    $region39: #{tpu_custom_call.1} parent=5 // pred_region
      %s462 = ssub.s32 %s9, 2
      // Predicated region
      $region41: #{tpu_custom_call.1} parent=39 // pred_check
        %p463 = pneg %p106
      $region42: #{tpu_custom_call.1} parent=39 // pred_check_branch
        %465 = sbr.rel (%p463) target = $region44
      $region43: #{tpu_custom_call.1} parent=39 // pred_region
        %p466 = scmp.lt.s32.totalorder %s15, 1
        %s467 = scalar_select %p466, %s15, 1
        %s468 = smul.addr %s467, 32
        %s469 = smul.addr %s468, 8
        %s470 = scalar_lea.vmem %s3, %s469
      $region44: #{tpu_custom_call.1} parent=39 // pred_fallthru
        _
    $region40: #{tpu_custom_call.1} parent=5 // pred_fallthru
      _
  $region6: #{tpu_custom_call.1} parent=0 // loop_footer
    %s13 = sadd.s32 1, %s9
  $region7: #{tpu_custom_call.1} parent=0 // loop_footer_branch
    %8 = sbr.rel target = $region3
  $region8: #{tpu_custom_call.1} parent=0 // loop_exit
    _

</llo_original>
